<compile_context>
chip_gen: v7x
topology: tpu7x:2x2x1
jax: 0.10.0
libtpu: 0.0.40
codegen_flags: <defaults>
</compile_context>

<pallas_src>
import functools

import jax
import jax.numpy as jnp
from jax.experimental import pallas as pl
from jax.experimental.pallas import tpu as pltpu


def _round_up(x, m):
    return (x + m - 1) // m * m


# ---------------------------------------------------------------------------
# Kernel: one batch tile of the RACs cell.
# ---------------------------------------------------------------------------
def _racs_kernel(data_ref, h_ref, wd_ref, wh_ref, b1_ref, b2_ref,
                 out_ref, hidden_ref, *, h_pad, compute_dtype):
    # Cast activation tiles to the compute dtype in-VMEM (cheap VPU op); the
    # matmuls still accumulate in f32.
    data = data_ref[...].astype(compute_dtype)
    h = h_ref[...].astype(compute_dtype)

    # Two wide MXU matmuls (fused Wih|h2o_d and Whh|h2o_h), f32 accumulation.
    y1 = jnp.dot(data, wd_ref[...], preferred_element_type=jnp.float32) + b1_ref[...]
    y2 = jnp.dot(h, wh_ref[...], preferred_element_type=jnp.float32) + b2_ref[...]

    # hidden = Wih(data) * Whh(h);  output = h2o(cat(data, h)).
    # Split at h_pad (multiple of 128) -> lane-aligned, no cross-lane shuffle.
    hidden_ref[...] = (y1[:, :h_pad] * y2[:, :h_pad]).astype(hidden_ref.dtype)
    out_ref[...] = (y1[:, h_pad:] + y2[:, h_pad:]).astype(out_ref.dtype)


# ---------------------------------------------------------------------------
# One-time weight fusion + padding (outside the hot path).
# ---------------------------------------------------------------------------
class PackedRACsParams:
    """Packs [Wih | h2o_d] and [Whh | h2o_h]; only the output axis is padded.

    Default compute dtype is bf16 when the parameters are f32 (MXU runs bf16
    natively on all gens; f32 is multi-pass emulation), weights stored in the
    compute dtype to halve their VMEM/HBM footprint.
    """

    def __init__(self, params, compute_dtype=None):
        wih_w = jnp.asarray(params["Wih_w"])
        E, H = wih_w.shape
        O = jnp.asarray(params["h2o_b"]).shape[-1]
        if compute_dtype is None:
            compute_dtype = jnp.bfloat16 if wih_w.dtype == jnp.float32 else wih_w.dtype
        compute_dtype = jnp.dtype(compute_dtype)

        H_p, O_p = _round_up(H, 128), _round_up(O, 128)
        HO_p = H_p + O_p

        wd = jnp.zeros((E, HO_p), compute_dtype)
        wd = wd.at[:, :H].set(jnp.asarray(params["Wih_w"]).astype(compute_dtype))
        wd = wd.at[:, H_p:H_p + O].set(jnp.asarray(params["h2o_wd"]).astype(compute_dtype))

        wh = jnp.zeros((H, HO_p), compute_dtype)
        wh = wh.at[:, :H].set(jnp.asarray(params["Whh_w"]).astype(compute_dtype))
        wh = wh.at[:, H_p:H_p + O].set(jnp.asarray(params["h2o_wh"]).astype(compute_dtype))

        b1 = jnp.zeros((1, HO_p), jnp.float32)
        b1 = b1.at[:, :H].set(jnp.asarray(params["Wih_b"], jnp.float32).reshape(1, -1))
        b1 = b1.at[:, H_p:H_p + O].set(jnp.asarray(params["h2o_b"], jnp.float32).reshape(1, -1))

        b2 = jnp.zeros((1, HO_p), jnp.float32)
        b2 = b2.at[:, :H].set(jnp.asarray(params["Whh_b"], jnp.float32).reshape(1, -1))

        self.wd, self.wh, self.b1, self.b2 = wd, wh, b1, b2
        self.compute_dtype = compute_dtype
        self.E, self.H, self.O = E, H, O
        self.H_p, self.O_p, self.HO_p = H_p, O_p, HO_p


# ---------------------------------------------------------------------------
# Helpers
# ---------------------------------------------------------------------------
def _vmem_capacity_bytes():
    try:
        cap = getattr(pltpu.get_tpu_info(), "vmem_capacity_bytes", None)
        if cap:
            return int(cap)
    except Exception:
        pass
    return 64 << 20  # conservative default (v7x per-TensorCore VMEM)


def _invariant_spec(shape, single_buffer):
    """BlockSpec for a grid-invariant (VMEM-resident) operand."""
    index_map = lambda i: (0,) * len(shape)
    if single_buffer:
        # Constant block across the grid -> no need to double-buffer it.
        return pl.BlockSpec(shape, index_map, pipeline_mode=pl.Buffered(1))
    return pl.BlockSpec(shape, index_map)


# ---------------------------------------------------------------------------
# Wrapper
# ---------------------------------------------------------------------------
def racs_forward(data, last_hidden, packed, *, max_block_batch=512):
    B, E = data.shape
    H = last_hidden.shape[1]
    assert E == packed.E and H == packed.H
    O = packed.O
    H_p, O_p, HO_p = packed.H_p, packed.O_p, packed.HO_p

    out_dtype = data.dtype
    act_itemsize = jnp.dtype(data.dtype).itemsize
    out_itemsize = jnp.dtype(out_dtype).itemsize
    w_itemsize = jnp.dtype(packed.wd.dtype).itemsize

    # ---- VMEM budgeting (per generation) ------------------------------------
    vmem_capacity = _vmem_capacity_bytes()
    vmem_target = int(vmem_capacity * 0.85)          # leave compiler headroom
    headroom = 4 << 20

    single_buffer_weights = hasattr(pl, "Buffered")
    w_copies = 1 if single_buffer_weights else 2
    weight_bytes = w_copies * (
        (packed.wd.size + packed.wh.size) * w_itemsize
        + (packed.b1.size + packed.b2.size) * 4
    )
    per_row_bytes = (
        2 * (E + H) * act_itemsize        # double-buffered input tiles
        + 2 * (H_p + O_p) * out_itemsize  # double-buffered output tiles
        + 2 * HO_p * 4                    # y1 / y2 f32 intermediates
        + (E + H) * w_itemsize            # in-kernel compute-dtype casts
    )

    # ---- Adaptive batch tile -------------------------------------------------
    if B <= 8:
        TB = B                               # block == full dim -> always legal
    else:
        TB = min(max_block_batch, (B // 8) * 8)
        budget = vmem_target - weight_bytes - headroom
        if budget > 0:
            fit = (budget // per_row_bytes) // 8 * 8
            TB = max(8, min(TB, fit)) if fit >= 8 else 8
        if TB >= 256:
            TB = (TB // 256) * 256           # fill the 256-wide MXU M dim
        elif TB >= 128:
            TB = 128

    # On 2-TensorCore parts (v7x-like: 64 MiB/TC VMEM) make sure the "parallel"
    # grid axis has at least 2 tiles so both cores get work.
    n_tiles = -(-B // TB)
    if vmem_capacity <= (96 << 20) and n_tiles == 1 and B >= 16:
        TB = max(8, _round_up(-(-B // 2), 8))
        n_tiles = -(-B // TB)
    grid = (n_tiles,)

    vmem_need = weight_bytes + TB * per_row_bytes + headroom
    vmem_limit = int(min(max(min(vmem_need, vmem_target), 32 << 20), vmem_capacity))

    flops = int(2 * B * (E + H) * HO_p)
    bytes_accessed = int(
        (packed.wd.size + packed.wh.size) * w_itemsize
        + (packed.b1.size + packed.b2.size) * 4
        + (data.size + last_hidden.size) * act_itemsize
        + B * (H_p + O_p) * out_itemsize
    )

    kernel = functools.partial(
        _racs_kernel, h_pad=H_p, compute_dtype=packed.compute_dtype)

    def build_call(single_buffer):
        in_specs = [
            pl.BlockSpec((TB, E), lambda i: (i, 0)),          # data   : batch-tiled
            pl.BlockSpec((TB, H), lambda i: (i, 0)),          # hidden : batch-tiled
            _invariant_spec((E, HO_p), single_buffer),        # fused Wd
            _invariant_spec((H, HO_p), single_buffer),        # fused Wh
            _invariant_spec((1, HO_p), single_buffer),        # fused bias 1
            _invariant_spec((1, HO_p), single_buffer),        # fused bias 2
        ]
        return pl.pallas_call(
            kernel,
            out_shape=(
                jax.ShapeDtypeStruct((B, O_p), out_dtype),    # output
                jax.ShapeDtypeStruct((B, H_p), out_dtype),    # hidden
            ),
            grid=grid,
            in_specs=in_specs,
            out_specs=(
                pl.BlockSpec((TB, O_p), lambda i: (i, 0)),
                pl.BlockSpec((TB, H_p), lambda i: (i, 0)),
            ),
            compiler_params=pltpu.CompilerParams(
                dimension_semantics=("parallel",),
                vmem_limit_bytes=vmem_limit,
            ),
            cost_estimate=pl.CostEstimate(
                flops=flops, transcendentals=0, bytes_accessed=bytes_accessed),
        )

    args = (data, last_hidden, packed.wd, packed.wh, packed.b1, packed.b2)
    try:
        out_p, hidden_p = build_call(single_buffer_weights)(*args)
    except Exception:
        if not single_buffer_weights:
            raise
        # Fallback for JAX versions where pipeline_mode/Buffered(1) is rejected.
        out_p, hidden_p = build_call(False)(*args)

    # Strip the lane padding (batch was never padded).
    return out_p[:, :O], hidden_p[:, :H]


# ---------------------------------------------------------------------------
# Params + pure-JAX reference
# ---------------------------------------------------------------------------
def init_params(key, embed_size, hidden_size, output_size, dtype=jnp.float32):
    """Deterministic synthetic init (kaiming-uniform-like bounds, as nn.Linear)."""
    E, H, O = embed_size, hidden_size, output_size
    ks = jax.random.split(key, 6)

    def lin(kw, kb, fan_in, fan_out):
        bound = 1.0 / jnp.sqrt(jnp.asarray(fan_in, dtype))
        w = jax.random.uniform(kw, (fan_in, fan_out), dtype, -bound, bound)  # [in, out]
        b = jax.random.uniform(kb, (1, fan_out), dtype, -bound, bound)
        return w, b

    wih_w, wih_b = lin(ks[0], ks[1], E, H)
    whh_w, whh_b = lin(ks[2], ks[3], H, H)
    h2o_w, h2o_b = lin(ks[4], ks[5], E + H, O)   # input_size = E + H

    return dict(
        Wih_w=wih_w, Wih_b=wih_b,
        Whh_w=whh_w, Whh_b=whh_b,
        h2o_wd=h2o_w[:E, :],     # part multiplying `data`
        h2o_wh=h2o_w[E:, :],     # part multiplying `last_hidden`
        h2o_b=h2o_b,
    )


def racs_reference(data, last_hidden, params, compute_dtype=None):
    """Pure-JAX reference. With compute_dtype set, inputs/weights are quantized
    the same way the kernel's fast path quantizes them (accumulation in f32)."""
    cast = (lambda x: x.astype(compute_dtype)) if compute_dtype is not None else (lambda x: x)
    wi = jnp.dot(cast(data), cast(params["Wih_w"]),
                 preferred_element_type=jnp.float32) + params["Wih_b"].astype(jnp.float32)
    wh = jnp.dot(cast(last_hidden), cast(params["Whh_w"]),
                 preferred_element_type=jnp.float32) + params["Whh_b"].astype(jnp.float32)
    hidden = wi * wh
    output = (jnp.dot(cast(data), cast(params["h2o_wd"]), preferred_element_type=jnp.float32)
              + jnp.dot(cast(last_hidden), cast(params["h2o_wh"]), preferred_element_type=jnp.float32)
              + params["h2o_b"].astype(jnp.float32))
    return output, hidden


if __name__ == "__main__":
    B, E, H, O = 8, 16, 32, 16   # batch, embed_size, hidden_size, output_size

    key = jax.random.PRNGKey(0)
    k_data, k_hidden, k_params = jax.random.split(key, 3)

    data = jax.random.normal(k_data, (B, E), jnp.float32)
    last_hidden = jax.random.normal(k_hidden, (B, H), jnp.float32)
    params = init_params(k_params, E, H, O)

    # 1) Exact-semantics check: f32 compute path vs pure-JAX f32 reference.
    packed_f32 = PackedRACsParams(params, compute_dtype=jnp.float32)
    out_f32, hid_f32 = racs_forward(data, last_hidden, packed_f32)
    jax.block_until_ready((out_f32, hid_f32))
    ref_out, ref_hid = racs_reference(data, last_hidden, params)
    assert jnp.allclose(out_f32, ref_out, atol=2e-5, rtol=2e-5), \
        float(jnp.max(jnp.abs(out_f32 - ref_out)))
    assert jnp.allclose(hid_f32, ref_hid, atol=2e-5, rtol=2e-5), \
        float(jnp.max(jnp.abs(hid_f32 - ref_hid)))

    # 2) Fast path (default): bf16 weights/activation tiles, f32 accumulation,
    #    checked against a reference quantized the same way.
    packed_bf16 = PackedRACsParams(params)
    out_b, hid_b = racs_forward(data, last_hidden, packed_bf16)
    jax.block_until_ready((out_b, hid_b))
    ref_out_b, ref_hid_b = racs_reference(data, last_hidden, params,
                                          compute_dtype=jnp.bfloat16)
    assert jnp.allclose(out_b, ref_out_b, atol=5e-4, rtol=5e-4), \
        float(jnp.max(jnp.abs(out_b - ref_out_b)))
    assert jnp.allclose(hid_b, ref_hid_b, atol=5e-4, rtol=5e-4), \
        float(jnp.max(jnp.abs(hid_b - ref_hid_b)))

    print("KERNEL_OK")
</pallas_src>

<mosaic_0001>
module attributes {stable_mosaic.version = 11 : i64} {
  func.func @_racs_kernel(%arg0: i32, %arg1: memref<8x16xf32, #tpu.memory_space<vmem>>, %arg2: memref<8x32xf32, #tpu.memory_space<vmem>>, %arg3: memref<16x256xf32, #tpu.memory_space<vmem>>, %arg4: memref<32x256xf32, #tpu.memory_space<vmem>>, %arg5: memref<1x256xf32, #tpu.memory_space<vmem>>, %arg6: memref<1x256xf32, #tpu.memory_space<vmem>>, %arg7: memref<8x128xf32, #tpu.memory_space<vmem>>, %arg8: memref<8x128xf32, #tpu.memory_space<vmem>>) attributes {dimension_semantics = [#tpu.dimension_semantics<parallel>], iteration_bounds = array<i64: 1>, scalar_prefetch = 0 : i64, scratch_operands = 0 : i64, tpu.core_type = #tpu.core_type<tc>, window_params = [{transform_indices = @transform_0, window_bounds = array<i64: 8, 16>}, {transform_indices = @transform_1, window_bounds = array<i64: 8, 32>}, {pipeline_mode = #tpu.pipeline_mode<synchronous>, transform_indices = @transform_2, window_bounds = array<i64: 16, 256>}, {pipeline_mode = #tpu.pipeline_mode<synchronous>, transform_indices = @transform_3, window_bounds = array<i64: 32, 256>}, {pipeline_mode = #tpu.pipeline_mode<synchronous>, transform_indices = @transform_4, window_bounds = array<i64: 1, 256>}, {pipeline_mode = #tpu.pipeline_mode<synchronous>, transform_indices = @transform_5, window_bounds = array<i64: 1, 256>}, {transform_indices = @transform_6, window_bounds = array<i64: 8, 128>}, {transform_indices = @transform_7, window_bounds = array<i64: 8, 128>}]} {
    %c0 = arith.constant 0 : index
    %c0_0 = arith.constant 0 : index
    %0 = vector.load %arg1[%c0, %c0_0] : memref<8x16xf32, #tpu.memory_space<vmem>>, vector<8x16xf32>
    %c0_1 = arith.constant 0 : index
    %c0_2 = arith.constant 0 : index
    %1 = vector.load %arg2[%c0_1, %c0_2] : memref<8x32xf32, #tpu.memory_space<vmem>>, vector<8x32xf32>
    %c0_3 = arith.constant 0 : index
    %c0_4 = arith.constant 0 : index
    %2 = vector.load %arg3[%c0_3, %c0_4] : memref<16x256xf32, #tpu.memory_space<vmem>>, vector<16x256xf32>
    %cst = arith.constant dense<0.000000e+00> : vector<8x256xf32>
    %3 = tpu.matmul %0, %2, %cst {dimension_numbers = #tpu.dot_dimension_numbers<[1], [0], [0], [1], [0, 0, 1, 1], [], []>} : vector<8x16xf32>, vector<16x256xf32>, vector<8x256xf32> -> vector<8x256xf32>
    %c0_5 = arith.constant 0 : index
    %c0_6 = arith.constant 0 : index
    %4 = vector.load %arg5[%c0_5, %c0_6] : memref<1x256xf32, #tpu.memory_space<vmem>>, vector<1x256xf32>
    %5 = vector.broadcast %4 : vector<1x256xf32> to vector<8x256xf32>
    %6 = arith.addf %3, %5 : vector<8x256xf32>
    %c0_7 = arith.constant 0 : index
    %c0_8 = arith.constant 0 : index
    %7 = vector.load %arg4[%c0_7, %c0_8] : memref<32x256xf32, #tpu.memory_space<vmem>>, vector<32x256xf32>
    %cst_9 = arith.constant dense<0.000000e+00> : vector<8x256xf32>
    %8 = tpu.matmul %1, %7, %cst_9 {dimension_numbers = #tpu.dot_dimension_numbers<[1], [0], [0], [1], [0, 0, 1, 1], [], []>} : vector<8x32xf32>, vector<32x256xf32>, vector<8x256xf32> -> vector<8x256xf32>
    %c0_10 = arith.constant 0 : index
    %c0_11 = arith.constant 0 : index
    %9 = vector.load %arg6[%c0_10, %c0_11] : memref<1x256xf32, #tpu.memory_space<vmem>>, vector<1x256xf32>
    %10 = vector.broadcast %9 : vector<1x256xf32> to vector<8x256xf32>
    %11 = arith.addf %8, %10 : vector<8x256xf32>
    %12 = vector.extract_strided_slice %6 {offsets = [0, 0], sizes = [8, 128], strides = [1, 1]} : vector<8x256xf32> to vector<8x128xf32>
    %13 = vector.extract_strided_slice %11 {offsets = [0, 0], sizes = [8, 128], strides = [1, 1]} : vector<8x256xf32> to vector<8x128xf32>
    %14 = arith.mulf %12, %13 : vector<8x128xf32>
    %c0_12 = arith.constant 0 : index
    %c0_13 = arith.constant 0 : index
    %15 = vector.load %arg8[%c0_12, %c0_13] : memref<8x128xf32, #tpu.memory_space<vmem>>, vector<8x128xf32>
    tpu.vector_store %arg8[%c0_12, %c0_13], %14 {strides = array<i32>} : memref<8x128xf32, #tpu.memory_space<vmem>>, vector<8x128xf32>,
    %16 = vector.extract_strided_slice %6 {offsets = [0, 128], sizes = [8, 128], strides = [1, 1]} : vector<8x256xf32> to vector<8x128xf32>
    %17 = vector.extract_strided_slice %11 {offsets = [0, 128], sizes = [8, 128], strides = [1, 1]} : vector<8x256xf32> to vector<8x128xf32>
    %18 = arith.addf %16, %17 : vector<8x128xf32>
    %c0_14 = arith.constant 0 : index
    %c0_15 = arith.constant 0 : index
    %19 = vector.load %arg7[%c0_14, %c0_15] : memref<8x128xf32, #tpu.memory_space<vmem>>, vector<8x128xf32>
    tpu.vector_store %arg7[%c0_14, %c0_15], %18 {strides = array<i32>} : memref<8x128xf32, #tpu.memory_space<vmem>>, vector<8x128xf32>,
    return
  }
  func.func @transform_0(%arg0: i32) -> (i32, i32) {
    %c0_i32 = arith.constant 0 : i32
    %c0_i32_0 = arith.constant 0 : i32
    return %arg0, %c0_i32 : i32, i32
  }
  func.func @transform_1(%arg0: i32) -> (i32, i32) {
    %c0_i32 = arith.constant 0 : i32
    %c0_i32_0 = arith.constant 0 : i32
    return %arg0, %c0_i32 : i32, i32
  }
  func.func @transform_2(%arg0: i32) -> (i32, i32) {
    %c0_i32 = arith.constant 0 : i32
    %c0_i32_0 = arith.constant 0 : i32
    %c0_i32_1 = arith.constant 0 : i32
    return %c0_i32, %c0_i32_0 : i32, i32
  }
  func.func @transform_3(%arg0: i32) -> (i32, i32) {
    %c0_i32 = arith.constant 0 : i32
    %c0_i32_0 = arith.constant 0 : i32
    %c0_i32_1 = arith.constant 0 : i32
    return %c0_i32, %c0_i32_0 : i32, i32
  }
  func.func @transform_4(%arg0: i32) -> (i32, i32) {
    %c0_i32 = arith.constant 0 : i32
    %c0_i32_0 = arith.constant 0 : i32
    %c0_i32_1 = arith.constant 0 : i32
    return %c0_i32, %c0_i32_0 : i32, i32
  }
  func.func @transform_5(%arg0: i32) -> (i32, i32) {
    %c0_i32 = arith.constant 0 : i32
    %c0_i32_0 = arith.constant 0 : i32
    %c0_i32_1 = arith.constant 0 : i32
    return %c0_i32, %c0_i32_0 : i32, i32
  }
  func.func @transform_6(%arg0: i32) -> (i32, i32) {
    %c0_i32 = arith.constant 0 : i32
    %c0_i32_0 = arith.constant 0 : i32
    return %arg0, %c0_i32 : i32, i32
  }
  func.func @transform_7(%arg0: i32) -> (i32, i32) {
    %c0_i32 = arith.constant 0 : i32
    %c0_i32_0 = arith.constant 0 : i32
    return %arg0, %c0_i32 : i32, i32
  }
}

module attributes {stable_mosaic.version = 11 : i64} {
  func.func @_racs_kernel(%arg0: i32, %arg1: memref<8x16xf32, #tpu.memory_space<vmem>>, %arg2: memref<8x32xf32, #tpu.memory_space<vmem>>, %arg3: memref<16x256xf32, #tpu.memory_space<vmem>>, %arg4: memref<32x256xf32, #tpu.memory_space<vmem>>, %arg5: memref<1x256xf32, #tpu.memory_space<vmem>>, %arg6: memref<1x256xf32, #tpu.memory_space<vmem>>, %arg7: memref<8x128xf32, #tpu.memory_space<vmem>>, %arg8: memref<8x128xf32, #tpu.memory_space<vmem>>) attributes {dimension_semantics = [#tpu.dimension_semantics<parallel>], iteration_bounds = array<i64: 1>, scalar_prefetch = 0 : i64, scratch_operands = 0 : i64, tpu.core_type = #tpu.core_type<tc>, window_params = [{transform_indices = @transform_0, window_bounds = array<i64: 8, 16>}, {transform_indices = @transform_1, window_bounds = array<i64: 8, 32>}, {pipeline_mode = #tpu.pipeline_mode<synchronous>, transform_indices = @transform_2, window_bounds = array<i64: 16, 256>}, {pipeline_mode = #tpu.pipeline_mode<synchronous>, transform_indices = @transform_3, window_bounds = array<i64: 32, 256>}, {pipeline_mode = #tpu.pipeline_mode<synchronous>, transform_indices = @transform_4, window_bounds = array<i64: 1, 256>}, {pipeline_mode = #tpu.pipeline_mode<synchronous>, transform_indices = @transform_5, window_bounds = array<i64: 1, 256>}, {transform_indices = @transform_6, window_bounds = array<i64: 8, 128>}, {transform_indices = @transform_7, window_bounds = array<i64: 8, 128>}]} {
    %c0 = arith.constant 0 : index
    %c0_0 = arith.constant 0 : index
    %0 = vector.load %arg1[%c0, %c0_0] : memref<8x16xf32, #tpu.memory_space<vmem>>, vector<8x16xf32>
    %c0_1 = arith.constant 0 : index
    %c0_2 = arith.constant 0 : index
    %1 = vector.load %arg2[%c0_1, %c0_2] : memref<8x32xf32, #tpu.memory_space<vmem>>, vector<8x32xf32>
    %c0_3 = arith.constant 0 : index
    %c0_4 = arith.constant 0 : index
    %2 = vector.load %arg3[%c0_3, %c0_4] : memref<16x256xf32, #tpu.memory_space<vmem>>, vector<16x256xf32>
    %cst = arith.constant dense<0.000000e+00> : vector<8x256xf32>
    %3 = tpu.matmul %0, %2, %cst {dimension_numbers = #tpu.dot_dimension_numbers<[1], [0], [0], [1], [0, 0, 1, 1], [], []>} : vector<8x16xf32>, vector<16x256xf32>, vector<8x256xf32> -> vector<8x256xf32>
    %c0_5 = arith.constant 0 : index
    %c0_6 = arith.constant 0 : index
    %4 = vector.load %arg5[%c0_5, %c0_6] : memref<1x256xf32, #tpu.memory_space<vmem>>, vector<1x256xf32>
    %5 = vector.broadcast %4 : vector<1x256xf32> to vector<8x256xf32>
    %6 = arith.addf %3, %5 : vector<8x256xf32>
    %c0_7 = arith.constant 0 : index
    %c0_8 = arith.constant 0 : index
    %7 = vector.load %arg4[%c0_7, %c0_8] : memref<32x256xf32, #tpu.memory_space<vmem>>, vector<32x256xf32>
    %cst_9 = arith.constant dense<0.000000e+00> : vector<8x256xf32>
    %8 = tpu.matmul %1, %7, %cst_9 {dimension_numbers = #tpu.dot_dimension_numbers<[1], [0], [0], [1], [0, 0, 1, 1], [], []>} : vector<8x32xf32>, vector<32x256xf32>, vector<8x256xf32> -> vector<8x256xf32>
    %c0_10 = arith.constant 0 : index
    %c0_11 = arith.constant 0 : index
    %9 = vector.load %arg6[%c0_10, %c0_11] : memref<1x256xf32, #tpu.memory_space<vmem>>, vector<1x256xf32>
    %10 = vector.broadcast %9 : vector<1x256xf32> to vector<8x256xf32>
    %11 = arith.addf %8, %10 : vector<8x256xf32>
    %12 = vector.extract_strided_slice %6 {offsets = [0, 0], sizes = [8, 128], strides = [1, 1]} : vector<8x256xf32> to vector<8x128xf32>
    %13 = vector.extract_strided_slice %11 {offsets = [0, 0], sizes = [8, 128], strides = [1, 1]} : vector<8x256xf32> to vector<8x128xf32>
    %14 = arith.mulf %12, %13 : vector<8x128xf32>
    %c0_12 = arith.constant 0 : index
    %c0_13 = arith.constant 0 : index
    %15 = vector.load %arg8[%c0_12, %c0_13] : memref<8x128xf32, #tpu.memory_space<vmem>>, vector<8x128xf32>
    tpu.vector_store %arg8[%c0_12, %c0_13], %14 {strides = array<i32>} : memref<8x128xf32, #tpu.memory_space<vmem>>, vector<8x128xf32>,
    %16 = vector.extract_strided_slice %6 {offsets = [0, 128], sizes = [8, 128], strides = [1, 1]} : vector<8x256xf32> to vector<8x128xf32>
    %17 = vector.extract_strided_slice %11 {offsets = [0, 128], sizes = [8, 128], strides = [1, 1]} : vector<8x256xf32> to vector<8x128xf32>
    %18 = arith.addf %16, %17 : vector<8x128xf32>
    %c0_14 = arith.constant 0 : index
    %c0_15 = arith.constant 0 : index
    %19 = vector.load %arg7[%c0_14, %c0_15] : memref<8x128xf32, #tpu.memory_space<vmem>>, vector<8x128xf32>
    tpu.vector_store %arg7[%c0_14, %c0_15], %18 {strides = array<i32>} : memref<8x128xf32, #tpu.memory_space<vmem>>, vector<8x128xf32>,
    return
  }
  func.func @transform_0(%arg0: i32) -> (i32, i32) {
    %c0_i32 = arith.constant 0 : i32
    %c0_i32_0 = arith.constant 0 : i32
    return %arg0, %c0_i32 : i32, i32
  }
  func.func @transform_1(%arg0: i32) -> (i32, i32) {
    %c0_i32 = arith.constant 0 : i32
    %c0_i32_0 = arith.constant 0 : i32
    return %arg0, %c0_i32 : i32, i32
  }
  func.func @transform_2(%arg0: i32) -> (i32, i32) {
    %c0_i32 = arith.constant 0 : i32
    %c0_i32_0 = arith.constant 0 : i32
    %c0_i32_1 = arith.constant 0 : i32
    return %c0_i32, %c0_i32_0 : i32, i32
  }
  func.func @transform_3(%arg0: i32) -> (i32, i32) {
    %c0_i32 = arith.constant 0 : i32
    %c0_i32_0 = arith.constant 0 : i32
    %c0_i32_1 = arith.constant 0 : i32
    return %c0_i32, %c0_i32_0 : i32, i32
  }
  func.func @transform_4(%arg0: i32) -> (i32, i32) {
    %c0_i32 = arith.constant 0 : i32
    %c0_i32_0 = arith.constant 0 : i32
    %c0_i32_1 = arith.constant 0 : i32
    return %c0_i32, %c0_i32_0 : i32, i32
  }
  func.func @transform_5(%arg0: i32) -> (i32, i32) {
    %c0_i32 = arith.constant 0 : i32
    %c0_i32_0 = arith.constant 0 : i32
    %c0_i32_1 = arith.constant 0 : i32
    return %c0_i32, %c0_i32_0 : i32, i32
  }
  func.func @transform_6(%arg0: i32) -> (i32, i32) {
    %c0_i32 = arith.constant 0 : i32
    %c0_i32_0 = arith.constant 0 : i32
    return %arg0, %c0_i32 : i32, i32
  }
  func.func @transform_7(%arg0: i32) -> (i32, i32) {
    %c0_i32 = arith.constant 0 : i32
    %c0_i32_0 = arith.constant 0 : i32
    return %arg0, %c0_i32 : i32, i32
  }
}

</mosaic_0001>

<llo_original>
// kernel: tpu_custom_call.1
$region0: #{tpu_custom_call.1}
  #allocation0 [shape = 'u32[]', space=smem, size = 0x4, offset = 0x4, fixed_abs, tag = 'smem constant byte address 0x4 - core index']
  #allocation1 [shape = 'u32[144,128]{1,0:T(1,128)}', space=vmem, size = 0x12000, scoped, tag = 'internal scratch']
  %s0 = inlined_call_operand.hbm [shape: f32[8,16], index: 0, kind: input, shape index: {}]
  %s1 = inlined_call_operand.hbm [shape: f32[8,32], index: 1, kind: input, shape index: {}]
  %s2 = inlined_call_operand.hbm [shape: f32[16,256], index: 2, kind: input, shape index: {}]
  %s3 = inlined_call_operand.hbm [shape: f32[32,256], index: 3, kind: input, shape index: {}]
  %s4 = inlined_call_operand.vmem [shape: f32[1,256], index: 4, kind: input, shape index: {}]
  %s5 = inlined_call_operand.vmem [shape: f32[1,256], index: 5, kind: input, shape index: {}]
  %s6 = inlined_call_operand.hbm [shape: f32[8,128], index: 6, kind: output, shape index: {0}]
  %s7 = inlined_call_operand.hbm [shape: f32[8,128], index: 7, kind: output, shape index: {1}]
  %8 = xla_tuple %s6, %s7
  %s9 = sld [smem:[#allocation0]]
  $region58: #{tpu_custom_call.1} parent=0
    _
  %s11 = ssub.s32 1, %s9
  %s12 = scalar_select 0, %s11, %s9
  $region1: #{tpu_custom_call.1} parent=0
    #allocation2 [shape = 'u8[4096]{0}', space=vmem, size = 0x1000, scoped, tag = 'input window, operand 0, single buffered']
    #allocation3 [shape = 's32[1]{0}', space=sflag, size = 0x4, scoped, tag = 'scoped memory for tpu_custom_call.1']
    #allocation4 [shape = 's32[1]{0}', space=sflag, size = 0x4, scoped, tag = 'scoped memory for tpu_custom_call.1']
    #allocation5 [shape = 'u8[4096]{0}', space=vmem, size = 0x1000, scoped, tag = 'input window, operand 1, single buffered']
    #allocation6 [shape = 's32[1]{0}', space=sflag, size = 0x4, scoped, tag = 'scoped memory for tpu_custom_call.1']
    #allocation7 [shape = 'u8[16384]{0}', space=vmem, size = 0x4000, scoped, tag = 'input window, operand 2, single buffered']
    #allocation8 [shape = 'u8[32768]{0}', space=vmem, size = 0x8000, scoped, tag = 'input window, operand 3, single buffered']
    #allocation9 [shape = 's32[1]{0}', space=sflag, size = 0x4, scoped, tag = 'scoped memory for tpu_custom_call.1']
    #allocation10 [shape = 'u8[4096]{0}', space=vmem, size = 0x1000, scoped, tag = 'output window, operand 0, single buffered']
    #allocation11 [shape = 'u8[4096]{0}', space=vmem, size = 0x1000, scoped, tag = 'output window, operand 1, single buffered']
    #allocation12 [shape = 's32[1]{0}', space=sflag, size = 0x4, scoped, tag = 'scoped memory for tpu_custom_call.1']
    %13 = vsyncpa [#allocation3], 0
    %14 = vsyncpa [#allocation6], 0
    %15 = vsyncpa [#allocation9], 0
    %16 = vsyncpa [#allocation4], 0
    %17 = vsyncpa [#allocation12], 0
    // Predicated region
    $region2: #{tpu_custom_call.1} parent=1 // pred_check
      _
    $region3: #{tpu_custom_call.1} parent=1 // pred_check_branch
      %19 = sbr.rel (0) target = $region5
    $region4: #{tpu_custom_call.1} parent=1 // pred_region
      %s21 = ssub.s32 128, 128
      %22 = vsyncadd [#allocation3], %s21
      %s24 = sshll.u32 [#allocation2], 4
      %s25 = int_to_ptr.vmem [resolvable:$true] %s24
      %27 = dma.hbm_to_vmem [thread:$0]  %s0, 128, %s25, [#allocation3]
    $region5: #{tpu_custom_call.1} parent=1 // pred_fallthru
      _
    // Predicated region
    $region6: #{tpu_custom_call.1} parent=1 // pred_check
      _
    $region7: #{tpu_custom_call.1} parent=1 // pred_check_branch
      %29 = sbr.rel (0) target = $region9
    $region8: #{tpu_custom_call.1} parent=1 // pred_region
      %s31 = ssub.s32 128, 128
      %32 = vsyncadd [#allocation6], %s31
      %s34 = sshll.u32 [#allocation5], 4
      %s35 = int_to_ptr.vmem [resolvable:$true] %s34
      %37 = dma.hbm_to_vmem [thread:$0]  %s1, 128, %s35, [#allocation6]
    $region9: #{tpu_custom_call.1} parent=1 // pred_fallthru
      _
    // Predicated region
    $region10: #{tpu_custom_call.1} parent=1 // pred_check
      _
    $region11: #{tpu_custom_call.1} parent=1 // pred_check_branch
      %39 = sbr.rel (0) target = $region13
    $region12: #{tpu_custom_call.1} parent=1 // pred_region
      %s41 = ssub.s32 512, 512
      %42 = vsyncadd [#allocation6], %s41
      %s43 = sshll.u32 [#allocation7], 4
      %s44 = int_to_ptr.vmem [resolvable:$true] %s43
      %49 = dma.hbm_to_vmem [thread:$0]  %s2, 512, %s44, [#allocation6], 256, 256, 16
    $region13: #{tpu_custom_call.1} parent=1 // pred_fallthru
      _
    // Predicated region
    $region14: #{tpu_custom_call.1} parent=1 // pred_check
      _
    $region15: #{tpu_custom_call.1} parent=1 // pred_check_branch
      %51 = sbr.rel (0) target = $region17
    $region16: #{tpu_custom_call.1} parent=1 // pred_region
      %s53 = ssub.s32 1024, 1024
      %54 = vsyncadd [#allocation9], %s53
      %s55 = sshll.u32 [#allocation8], 4
      %s56 = int_to_ptr.vmem [resolvable:$true] %s55
      %61 = dma.hbm_to_vmem [thread:$0]  %s3, 1024, %s56, [#allocation9], 256, 256, 16
    $region17: #{tpu_custom_call.1} parent=1 // pred_fallthru
      _
    // Predicated region
    $region18: #{tpu_custom_call.1} parent=1 // pred_check
      _
    $region19: #{tpu_custom_call.1} parent=1 // pred_check_branch
      %63 = sbr.rel (0) target = $region21
    $region20: #{tpu_custom_call.1} parent=1 // pred_region
      _
    $region21: #{tpu_custom_call.1} parent=1 // pred_fallthru
      _
    // Predicated region
    $region22: #{tpu_custom_call.1} parent=1 // pred_check
      _
    $region23: #{tpu_custom_call.1} parent=1 // pred_check_branch
      %65 = sbr.rel (0) target = $region25
    $region24: #{tpu_custom_call.1} parent=1 // pred_region
      _
    $region25: #{tpu_custom_call.1} parent=1 // pred_fallthru
      _
    // Predicated region
    $region26: #{tpu_custom_call.1} parent=1 // pred_check
      _
    $region27: #{tpu_custom_call.1} parent=1 // pred_check_branch
      %67 = sbr.rel (0) target = $region29
    $region28: #{tpu_custom_call.1} parent=1 // pred_region
      %68 = dma.done [#allocation3], 128
    $region29: #{tpu_custom_call.1} parent=1 // pred_fallthru
      _
    // Predicated region
    $region30: #{tpu_custom_call.1} parent=1 // pred_check
      _
    $region31: #{tpu_custom_call.1} parent=1 // pred_check_branch
      %70 = sbr.rel (0) target = $region33
    $region32: #{tpu_custom_call.1} parent=1 // pred_region
      %71 = dma.done [#allocation6], 128
    $region33: #{tpu_custom_call.1} parent=1 // pred_fallthru
      _
    // Predicated region
    $region34: #{tpu_custom_call.1} parent=1 // pred_check
      _
    $region35: #{tpu_custom_call.1} parent=1 // pred_check_branch
      %73 = sbr.rel (0) target = $region37
    $region36: #{tpu_custom_call.1} parent=1 // pred_region
      %74 = dma.done [#allocation6], 512
    $region37: #{tpu_custom_call.1} parent=1 // pred_fallthru
      _
    // Predicated region
    $region38: #{tpu_custom_call.1} parent=1 // pred_check
      _
    $region39: #{tpu_custom_call.1} parent=1 // pred_check_branch
      %76 = sbr.rel (0) target = $region41
    $region40: #{tpu_custom_call.1} parent=1 // pred_region
      %77 = dma.done [#allocation9], 1024
    $region41: #{tpu_custom_call.1} parent=1 // pred_fallthru
      _
    %v78 = vld [vmem:[#allocation2] sm:$0xff]
    %v79 = vld [vmem:[#allocation5] sm:$0xff]
    %v80 = vld [vmem:[#allocation7] sm:$0xff]
    %v81 = vld [vmem:[#allocation7 + $0x8] sm:$0xff]
    %v82 = vld [vmem:[#allocation7 + $0x10] sm:$0xff]
    %v83 = vld [vmem:[#allocation7 + $0x18] sm:$0xff]
    %v84 = vld [vmem:[%s4] sm:$0x3]
    %v86 = vlaneseq
    %v87 = vshrl.u32 %v86, 7
    %v88 = vsub.s32 0, %v87
    %v89 = vrot.slane %v84, %v88
    %v90 = vlaneseq
    %v91 = vshrl.u32 %v90, 7
    %v92 = vsub.s32 1, %v91
    %v93 = vrot.slane %v84, %v92
    %vm96 = vcmask 130048
    %v98 = vsel %vm96, %v78, 0
    %100 = vmatprep.subr.mxu0 %v81
    %101 = vmatpush1.msra.mxu0 %v80
    %102 = vmatprep.subr.mxu0 %v83
    %103 = vmatpush1.msra.mxu0 %v82
    %104 = vmatprep.subr.mxu0 0.0
    %105 = vmatpush1.msra.mxu0 0.0
    %106 = vmatprep.subr.mxu0 0.0
    %107 = vmatpush1.msra.mxu0 0.0
    %108 = vmatprep.subr.mxu0 0.0
    %109 = vmatpush1.msra.mxu0 0.0
    %110 = vmatprep.subr.mxu0 0.0
    %111 = vmatpush1.msra.mxu0 0.0
    %112 = vmatprep.subr.mxu0 0.0
    %113 = vmatpush1.msra.mxu0 0.0
    %114 = vmatprep.subr.mxu0 0.0
    %115 = vmatpush1.msra.mxu0 0.0
    %116 = vmatprep.subr.mxu0 0.0
    %117 = vmatpush1.msra.mxu0 0.0
    %118 = vmatprep.subr.mxu0 0.0
    %119 = vmatpush1.msra.mxu0 0.0
    %120 = vmatprep.subr.mxu0 0.0
    %121 = vmatpush1.msra.mxu0 0.0
    %122 = vmatprep.subr.mxu0 0.0
    %123 = vmatpush1.msra.mxu0 0.0
    %124 = vmatprep.subr.mxu0 0.0
    %125 = vmatpush1.msra.mxu0 0.0
    %126 = vmatprep.subr.mxu0 0.0
    %127 = vmatpush1.msra.mxu0 0.0
    %128 = vmatprep.subr.mxu0 0.0
    %129 = vmatpush1.msra.mxu0 0.0
    %130 = vmatprep.subr.mxu0 0.0
    %131 = vmatpush1.msra.mxu0 0.0
    %132 = vmatprep.subr.mxu0 0.0
    %133 = vmatpush1.msra.mxu0 0.0
    %134 = vmatprep.subr.mxu0 0.0
    %135 = vmatpush1.msra.mxu0 0.0
    %136 = vmatprep.subr.mxu0 0.0
    %137 = vmatpush1.msra.mxu0 0.0
    %138 = vmatprep.subr.mxu0 0.0
    %139 = vmatpush1.msra.mxu0 0.0
    %140 = vmatprep.subr.mxu0 0.0
    %141 = vmatpush1.msra.mxu0 0.0
    %142 = vmatprep.subr.mxu0 0.0
    %143 = vmatpush1.msra.mxu0 0.0
    %144 = vmatprep.subr.mxu0 0.0
    %145 = vmatpush1.msra.mxu0 0.0
    %146 = vmatprep.subr.mxu0 0.0
    %147 = vmatpush1.msra.mxu0 0.0
    %148 = vmatprep.subr.mxu0 0.0
    %149 = vmatpush1.msra.mxu0 0.0
    %150 = vmatprep.subr.mxu0 0.0
    %151 = vmatpush1.msra.mxu0 0.0
    %152 = vmatprep.subr.mxu0 0.0
    %153 = vmatpush1.msra.mxu0 0.0
    %154 = vmatprep.subr.mxu0 0.0
    %155 = vmatpush1.msra.mxu0 0.0
    %156 = vmatprep.subr.mxu0 0.0
    %157 = vmatpush1.msra.mxu0 0.0
    %158 = vmatprep.subr.mxu0 0.0
    %159 = vmatpush1.msra.mxu0 0.0
    %160 = vmatprep.subr.mxu0 0.0
    %161 = vmatpush1.msra.mxu0 0.0
    %162 = vmatprep.subr.mxu0 0.0
    %163 = vmatpush1.msra.mxu0 0.0
    %164 = vmatprep.mubr.f32.mxu0 0.0
    %165 = vmatmul.mubr.f32.gmra.mrb[0].mxu0 %v98
    %v166 = vpop.f32.mrb[0].mxu0
    %v167 = vadd.f32 %v89, %v166
    %v168 = vpop.f32.mrb[0].mxu0
    %v169 = vadd.f32 %v93, %v168
    %170 = vdwg.mxu0
    %v171 = vld [vmem:[#allocation8] sm:$0xff]
    %v172 = vld [vmem:[#allocation8 + $0x8] sm:$0xff]
    %v173 = vld [vmem:[#allocation8 + $0x10] sm:$0xff]
    %v174 = vld [vmem:[#allocation8 + $0x18] sm:$0xff]
    %v175 = vld [vmem:[#allocation8 + $0x20] sm:$0xff]
    %v176 = vld [vmem:[#allocation8 + $0x28] sm:$0xff]
    %v177 = vld [vmem:[#allocation8 + $0x30] sm:$0xff]
    %v178 = vld [vmem:[#allocation8 + $0x38] sm:$0xff]
    %v179 = vld [vmem:[%s5] sm:$0x3]
    %v181 = vlaneseq
    %v182 = vshrl.u32 %v181, 7
    %v183 = vsub.s32 0, %v182
    %v184 = vrot.slane %v179, %v183
    %v185 = vlaneseq
    %v186 = vshrl.u32 %v185, 7
    %v187 = vsub.s32 1, %v186
    %v188 = vrot.slane %v179, %v187
    %vm191 = vcmask 261120
    %v193 = vsel %vm191, %v79, 0
    %195 = vmatprep.subr.mxu0 %v172
    %196 = vmatpush1.msra.mxu0 %v171
    %197 = vmatprep.subr.mxu0 %v174
    %198 = vmatpush1.msra.mxu0 %v173
    %199 = vmatprep.subr.mxu0 %v176
    %200 = vmatpush1.msra.mxu0 %v175
    %201 = vmatprep.subr.mxu0 %v178
    %202 = vmatpush1.msra.mxu0 %v177
    %203 = vmatprep.subr.mxu0 0.0
    %204 = vmatpush1.msra.mxu0 0.0
    %205 = vmatprep.subr.mxu0 0.0
    %206 = vmatpush1.msra.mxu0 0.0
    %207 = vmatprep.subr.mxu0 0.0
    %208 = vmatpush1.msra.mxu0 0.0
    %209 = vmatprep.subr.mxu0 0.0
    %210 = vmatpush1.msra.mxu0 0.0
    %211 = vmatprep.subr.mxu0 0.0
    %212 = vmatpush1.msra.mxu0 0.0
    %213 = vmatprep.subr.mxu0 0.0
    %214 = vmatpush1.msra.mxu0 0.0
    %215 = vmatprep.subr.mxu0 0.0
    %216 = vmatpush1.msra.mxu0 0.0
    %217 = vmatprep.subr.mxu0 0.0
    %218 = vmatpush1.msra.mxu0 0.0
    %219 = vmatprep.subr.mxu0 0.0
    %220 = vmatpush1.msra.mxu0 0.0
    %221 = vmatprep.subr.mxu0 0.0
    %222 = vmatpush1.msra.mxu0 0.0
    %223 = vmatprep.subr.mxu0 0.0
    %224 = vmatpush1.msra.mxu0 0.0
    %225 = vmatprep.subr.mxu0 0.0
    %226 = vmatpush1.msra.mxu0 0.0
    %227 = vmatprep.subr.mxu0 0.0
    %228 = vmatpush1.msra.mxu0 0.0
    %229 = vmatprep.subr.mxu0 0.0
    %230 = vmatpush1.msra.mxu0 0.0
    %231 = vmatprep.subr.mxu0 0.0
    %232 = vmatpush1.msra.mxu0 0.0
    %233 = vmatprep.subr.mxu0 0.0
    %234 = vmatpush1.msra.mxu0 0.0
    %235 = vmatprep.subr.mxu0 0.0
    %236 = vmatpush1.msra.mxu0 0.0
    %237 = vmatprep.subr.mxu0 0.0
    %238 = vmatpush1.msra.mxu0 0.0
    %239 = vmatprep.subr.mxu0 0.0
    %240 = vmatpush1.msra.mxu0 0.0
    %241 = vmatprep.subr.mxu0 0.0
    %242 = vmatpush1.msra.mxu0 0.0
    %243 = vmatprep.subr.mxu0 0.0
    %244 = vmatpush1.msra.mxu0 0.0
    %245 = vmatprep.subr.mxu0 0.0
    %246 = vmatpush1.msra.mxu0 0.0
    %247 = vmatprep.subr.mxu0 0.0
    %248 = vmatpush1.msra.mxu0 0.0
    %249 = vmatprep.subr.mxu0 0.0
    %250 = vmatpush1.msra.mxu0 0.0
    %251 = vmatprep.subr.mxu0 0.0
    %252 = vmatpush1.msra.mxu0 0.0
    %253 = vmatprep.subr.mxu0 0.0
    %254 = vmatpush1.msra.mxu0 0.0
    %255 = vmatprep.subr.mxu0 0.0
    %256 = vmatpush1.msra.mxu0 0.0
    %257 = vmatprep.subr.mxu0 0.0
    %258 = vmatpush1.msra.mxu0 0.0
    %259 = vmatprep.mubr.f32.mxu0 0.0
    %260 = vmatmul.mubr.f32.gmra.mrb[0].mxu0 %v193
    %v261 = vpop.f32.mrb[0].mxu0
    %v262 = vadd.f32 %v184, %v261
    %v263 = vpop.f32.mrb[0].mxu0
    %v264 = vadd.f32 %v188, %v263
    %265 = vdwg.mxu0
    %v266 = vmul.f32 %v167, %v262
    %267 = vst [vmem:[#allocation11] sm:$0xff] %v266
    %v268 = vadd.f32 %v169, %v264
    %269 = vst [vmem:[#allocation10] sm:$0xff] %v268
    // Predicated region
    $region42: #{tpu_custom_call.1} parent=1 // pred_check
      _
    $region43: #{tpu_custom_call.1} parent=1 // pred_check_branch
      %271 = sbr.rel (0) target = $region45
    $region44: #{tpu_custom_call.1} parent=1 // pred_region
      %s273 = ssub.s32 128, 128
      %274 = vsyncadd [#allocation4], %s273
      %s276 = sshll.u32 [#allocation10], 4
      %s277 = int_to_ptr.vmem [resolvable:$true] %s276
      %279 = dma.vmem_to_hbm [thread:$0]  %s277, 128, %s6, [#allocation4]
    $region45: #{tpu_custom_call.1} parent=1 // pred_fallthru
      _
    // Predicated region
    $region46: #{tpu_custom_call.1} parent=1 // pred_check
      _
    $region47: #{tpu_custom_call.1} parent=1 // pred_check_branch
      %281 = sbr.rel (0) target = $region49
    $region48: #{tpu_custom_call.1} parent=1 // pred_region
      %s283 = ssub.s32 128, 128
      %284 = vsyncadd [#allocation12], %s283
      %s286 = sshll.u32 [#allocation11], 4
      %s287 = int_to_ptr.vmem [resolvable:$true] %s286
      %289 = dma.vmem_to_hbm [thread:$0]  %s287, 128, %s7, [#allocation12]
    $region49: #{tpu_custom_call.1} parent=1 // pred_fallthru
      _
    // Predicated region
    $region50: #{tpu_custom_call.1} parent=1 // pred_check
      _
    $region51: #{tpu_custom_call.1} parent=1 // pred_check_branch
      %291 = sbr.rel (0) target = $region53
    $region52: #{tpu_custom_call.1} parent=1 // pred_region
      %292 = dma.done [#allocation4], 128
    $region53: #{tpu_custom_call.1} parent=1 // pred_fallthru
      _
    // Predicated region
    $region54: #{tpu_custom_call.1} parent=1 // pred_check
      _
    $region55: #{tpu_custom_call.1} parent=1 // pred_check_branch
      %294 = sbr.rel (0) target = $region57
    $region56: #{tpu_custom_call.1} parent=1 // pred_region
      %295 = dma.done [#allocation12], 128
    $region57: #{tpu_custom_call.1} parent=1 // pred_fallthru
      _
    %296 = vsyncpa [#allocation3], 1
    %297 = vsyncpa [#allocation6], 1
    %298 = vsyncpa [#allocation9], 1
    %299 = vsyncpa [#allocation4], 1
    %300 = vsyncpa [#allocation12], 1

// kernel: tpu_custom_call.1
$region0: #{tpu_custom_call.1}
  #allocation0 [shape = 'u32[]', space=smem, size = 0x4, offset = 0x4, fixed_abs, tag = 'smem constant byte address 0x4 - core index']
  #allocation1 [shape = 'u32[144,128]{1,0:T(1,128)}', space=vmem, size = 0x12000, scoped, tag = 'internal scratch']
  %s0 = inlined_call_operand.hbm [shape: f32[8,16], index: 0, kind: input, shape index: {}]
  %s1 = inlined_call_operand.hbm [shape: f32[8,32], index: 1, kind: input, shape index: {}]
  %s2 = inlined_call_operand.hbm [shape: f32[16,256], index: 2, kind: input, shape index: {}]
  %s3 = inlined_call_operand.hbm [shape: f32[32,256], index: 3, kind: input, shape index: {}]
  %s4 = inlined_call_operand.vmem [shape: f32[1,256], index: 4, kind: input, shape index: {}]
  %s5 = inlined_call_operand.vmem [shape: f32[1,256], index: 5, kind: input, shape index: {}]
  %s6 = inlined_call_operand.hbm [shape: f32[8,128], index: 6, kind: output, shape index: {0}]
  %s7 = inlined_call_operand.hbm [shape: f32[8,128], index: 7, kind: output, shape index: {1}]
  %8 = xla_tuple %s6, %s7
  %s9 = sld [smem:[#allocation0]]
  $region58: #{tpu_custom_call.1} parent=0
    _
  %s11 = ssub.s32 1, %s9
  %s12 = scalar_select 0, %s11, %s9
  $region1: #{tpu_custom_call.1} parent=0
    #allocation2 [shape = 'u8[4096]{0}', space=vmem, size = 0x1000, scoped, tag = 'input window, operand 0, single buffered']
    #allocation3 [shape = 's32[1]{0}', space=sflag, size = 0x4, scoped, tag = 'scoped memory for tpu_custom_call.1']
    #allocation4 [shape = 's32[1]{0}', space=sflag, size = 0x4, scoped, tag = 'scoped memory for tpu_custom_call.1']
    #allocation5 [shape = 'u8[4096]{0}', space=vmem, size = 0x1000, scoped, tag = 'input window, operand 1, single buffered']
    #allocation6 [shape = 's32[1]{0}', space=sflag, size = 0x4, scoped, tag = 'scoped memory for tpu_custom_call.1']
    #allocation7 [shape = 'u8[16384]{0}', space=vmem, size = 0x4000, scoped, tag = 'input window, operand 2, single buffered']
    #allocation8 [shape = 'u8[32768]{0}', space=vmem, size = 0x8000, scoped, tag = 'input window, operand 3, single buffered']
    #allocation9 [shape = 's32[1]{0}', space=sflag, size = 0x4, scoped, tag = 'scoped memory for tpu_custom_call.1']
    #allocation10 [shape = 'u8[4096]{0}', space=vmem, size = 0x1000, scoped, tag = 'output window, operand 0, single buffered']
    #allocation11 [shape = 'u8[4096]{0}', space=vmem, size = 0x1000, scoped, tag = 'output window, operand 1, single buffered']
    #allocation12 [shape = 's32[1]{0}', space=sflag, size = 0x4, scoped, tag = 'scoped memory for tpu_custom_call.1']
    %13 = vsyncpa [#allocation3], 0
    %14 = vsyncpa [#allocation6], 0
    %15 = vsyncpa [#allocation9], 0
    %16 = vsyncpa [#allocation4], 0
    %17 = vsyncpa [#allocation12], 0
    // Predicated region
    $region2: #{tpu_custom_call.1} parent=1 // pred_check
      _
    $region3: #{tpu_custom_call.1} parent=1 // pred_check_branch
      %19 = sbr.rel (0) target = $region5
    $region4: #{tpu_custom_call.1} parent=1 // pred_region
      %s21 = ssub.s32 128, 128
      %22 = vsyncadd [#allocation3], %s21
      %s24 = sshll.u32 [#allocation2], 4
      %s25 = int_to_ptr.vmem [resolvable:$true] %s24
      %27 = dma.hbm_to_vmem [thread:$0]  %s0, 128, %s25, [#allocation3]
    $region5: #{tpu_custom_call.1} parent=1 // pred_fallthru
      _
    // Predicated region
    $region6: #{tpu_custom_call.1} parent=1 // pred_check
      _
    $region7: #{tpu_custom_call.1} parent=1 // pred_check_branch
      %29 = sbr.rel (0) target = $region9
    $region8: #{tpu_custom_call.1} parent=1 // pred_region
      %s31 = ssub.s32 128, 128
      %32 = vsyncadd [#allocation6], %s31
      %s34 = sshll.u32 [#allocation5], 4
      %s35 = int_to_ptr.vmem [resolvable:$true] %s34
      %37 = dma.hbm_to_vmem [thread:$0]  %s1, 128, %s35, [#allocation6]
    $region9: #{tpu_custom_call.1} parent=1 // pred_fallthru
      _
    // Predicated region
    $region10: #{tpu_custom_call.1} parent=1 // pred_check
      _
    $region11: #{tpu_custom_call.1} parent=1 // pred_check_branch
      %39 = sbr.rel (0) target = $region13
    $region12: #{tpu_custom_call.1} parent=1 // pred_region
      %s41 = ssub.s32 512, 512
      %42 = vsyncadd [#allocation6], %s41
      %s43 = sshll.u32 [#allocation7], 4
      %s44 = int_to_ptr.vmem [resolvable:$true] %s43
      %49 = dma.hbm_to_vmem [thread:$0]  %s2, 512, %s44, [#allocation6], 256, 256, 16
    $region13: #{tpu_custom_call.1} parent=1 // pred_fallthru
      _
    // Predicated region
    $region14: #{tpu_custom_call.1} parent=1 // pred_check
      _
    $region15: #{tpu_custom_call.1} parent=1 // pred_check_branch
      %51 = sbr.rel (0) target = $region17
    $region16: #{tpu_custom_call.1} parent=1 // pred_region
      %s53 = ssub.s32 1024, 1024
      %54 = vsyncadd [#allocation9], %s53
      %s55 = sshll.u32 [#allocation8], 4
      %s56 = int_to_ptr.vmem [resolvable:$true] %s55
      %61 = dma.hbm_to_vmem [thread:$0]  %s3, 1024, %s56, [#allocation9], 256, 256, 16
    $region17: #{tpu_custom_call.1} parent=1 // pred_fallthru
      _
    // Predicated region
    $region18: #{tpu_custom_call.1} parent=1 // pred_check
      _
    $region19: #{tpu_custom_call.1} parent=1 // pred_check_branch
      %63 = sbr.rel (0) target = $region21
    $region20: #{tpu_custom_call.1} parent=1 // pred_region
      _
    $region21: #{tpu_custom_call.1} parent=1 // pred_fallthru
      _
    // Predicated region
    $region22: #{tpu_custom_call.1} parent=1 // pred_check
      _
    $region23: #{tpu_custom_call.1} parent=1 // pred_check_branch
      %65 = sbr.rel (0) target = $region25
    $region24: #{tpu_custom_call.1} parent=1 // pred_region
      _
    $region25: #{tpu_custom_call.1} parent=1 // pred_fallthru
      _
    // Predicated region
    $region26: #{tpu_custom_call.1} parent=1 // pred_check
      _
    $region27: #{tpu_custom_call.1} parent=1 // pred_check_branch
      %67 = sbr.rel (0) target = $region29
    $region28: #{tpu_custom_call.1} parent=1 // pred_region
      %68 = dma.done [#allocation3], 128
    $region29: #{tpu_custom_call.1} parent=1 // pred_fallthru
      _
    // Predicated region
    $region30: #{tpu_custom_call.1} parent=1 // pred_check
      _
    $region31: #{tpu_custom_call.1} parent=1 // pred_check_branch
      %70 = sbr.rel (0) target = $region33
    $region32: #{tpu_custom_call.1} parent=1 // pred_region
      %71 = dma.done [#allocation6], 128
    $region33: #{tpu_custom_call.1} parent=1 // pred_fallthru
      _
    // Predicated region
    $region34: #{tpu_custom_call.1} parent=1 // pred_check
      _
    $region35: #{tpu_custom_call.1} parent=1 // pred_check_branch
      %73 = sbr.rel (0) target = $region37
    $region36: #{tpu_custom_call.1} parent=1 // pred_region
      %74 = dma.done [#allocation6], 512
    $region37: #{tpu_custom_call.1} parent=1 // pred_fallthru
      _
    // Predicated region
    $region38: #{tpu_custom_call.1} parent=1 // pred_check
      _
    $region39: #{tpu_custom_call.1} parent=1 // pred_check_branch
      %76 = sbr.rel (0) target = $region41
    $region40: #{tpu_custom_call.1} parent=1 // pred_region
      %77 = dma.done [#allocation9], 1024
    $region41: #{tpu_custom_call.1} parent=1 // pred_fallthru
      _
    %v78 = vld [vmem:[#allocation2] sm:$0xff]
    %v79 = vld [vmem:[#allocation5] sm:$0xff]
    %v80 = vld [vmem:[#allocation7] sm:$0xff]
    %v81 = vld [vmem:[#allocation7 + $0x8] sm:$0xff]
    %v82 = vld [vmem:[#allocation7 + $0x10] sm:$0xff]
    %v83 = vld [vmem:[#allocation7 + $0x18] sm:$0xff]
    %v84 = vld [vmem:[%s4] sm:$0x3]
    %v86 = vlaneseq
    %v87 = vshrl.u32 %v86, 7
    %v88 = vsub.s32 0, %v87
    %v89 = vrot.slane %v84, %v88
    %v90 = vlaneseq
    %v91 = vshrl.u32 %v90, 7
    %v92 = vsub.s32 1, %v91
    %v93 = vrot.slane %v84, %v92
    %vm96 = vcmask 130048
    %v98 = vsel %vm96, %v78, 0
    %100 = vmatprep.subr.mxu0 %v81
    %101 = vmatpush1.msra.mxu0 %v80
    %102 = vmatprep.subr.mxu0 %v83
    %103 = vmatpush1.msra.mxu0 %v82
    %104 = vmatprep.subr.mxu0 0.0
    %105 = vmatpush1.msra.mxu0 0.0
    %106 = vmatprep.subr.mxu0 0.0
    %107 = vmatpush1.msra.mxu0 0.0
    %108 = vmatprep.subr.mxu0 0.0
    %109 = vmatpush1.msra.mxu0 0.0
    %110 = vmatprep.subr.mxu0 0.0
    %111 = vmatpush1.msra.mxu0 0.0
    %112 = vmatprep.subr.mxu0 0.0
    %113 = vmatpush1.msra.mxu0 0.0
    %114 = vmatprep.subr.mxu0 0.0
    %115 = vmatpush1.msra.mxu0 0.0
    %116 = vmatprep.subr.mxu0 0.0
    %117 = vmatpush1.msra.mxu0 0.0
    %118 = vmatprep.subr.mxu0 0.0
    %119 = vmatpush1.msra.mxu0 0.0
    %120 = vmatprep.subr.mxu0 0.0
    %121 = vmatpush1.msra.mxu0 0.0
    %122 = vmatprep.subr.mxu0 0.0
    %123 = vmatpush1.msra.mxu0 0.0
    %124 = vmatprep.subr.mxu0 0.0
    %125 = vmatpush1.msra.mxu0 0.0
    %126 = vmatprep.subr.mxu0 0.0
    %127 = vmatpush1.msra.mxu0 0.0
    %128 = vmatprep.subr.mxu0 0.0
    %129 = vmatpush1.msra.mxu0 0.0
    %130 = vmatprep.subr.mxu0 0.0
    %131 = vmatpush1.msra.mxu0 0.0
    %132 = vmatprep.subr.mxu0 0.0
    %133 = vmatpush1.msra.mxu0 0.0
    %134 = vmatprep.subr.mxu0 0.0
    %135 = vmatpush1.msra.mxu0 0.0
    %136 = vmatprep.subr.mxu0 0.0
    %137 = vmatpush1.msra.mxu0 0.0
    %138 = vmatprep.subr.mxu0 0.0
    %139 = vmatpush1.msra.mxu0 0.0
    %140 = vmatprep.subr.mxu0 0.0
    %141 = vmatpush1.msra.mxu0 0.0
    %142 = vmatprep.subr.mxu0 0.0
    %143 = vmatpush1.msra.mxu0 0.0
    %144 = vmatprep.subr.mxu0 0.0
    %145 = vmatpush1.msra.mxu0 0.0
    %146 = vmatprep.subr.mxu0 0.0
    %147 = vmatpush1.msra.mxu0 0.0
    %148 = vmatprep.subr.mxu0 0.0
    %149 = vmatpush1.msra.mxu0 0.0
    %150 = vmatprep.subr.mxu0 0.0
    %151 = vmatpush1.msra.mxu0 0.0
    %152 = vmatprep.subr.mxu0 0.0
    %153 = vmatpush1.msra.mxu0 0.0
    %154 = vmatprep.subr.mxu0 0.0
    %155 = vmatpush1.msra.mxu0 0.0
    %156 = vmatprep.subr.mxu0 0.0
    %157 = vmatpush1.msra.mxu0 0.0
    %158 = vmatprep.subr.mxu0 0.0
    %159 = vmatpush1.msra.mxu0 0.0
    %160 = vmatprep.subr.mxu0 0.0
    %161 = vmatpush1.msra.mxu0 0.0
    %162 = vmatprep.subr.mxu0 0.0
    %163 = vmatpush1.msra.mxu0 0.0
    %164 = vmatprep.mubr.f32.mxu0 0.0
    %165 = vmatmul.mubr.f32.gmra.mrb[0].mxu0 %v98
    %v166 = vpop.f32.mrb[0].mxu0
    %v167 = vadd.f32 %v89, %v166
    %v168 = vpop.f32.mrb[0].mxu0
    %v169 = vadd.f32 %v93, %v168
    %170 = vdwg.mxu0
    %v171 = vld [vmem:[#allocation8] sm:$0xff]
    %v172 = vld [vmem:[#allocation8 + $0x8] sm:$0xff]
    %v173 = vld [vmem:[#allocation8 + $0x10] sm:$0xff]
    %v174 = vld [vmem:[#allocation8 + $0x18] sm:$0xff]
    %v175 = vld [vmem:[#allocation8 + $0x20] sm:$0xff]
    %v176 = vld [vmem:[#allocation8 + $0x28] sm:$0xff]
    %v177 = vld [vmem:[#allocation8 + $0x30] sm:$0xff]
    %v178 = vld [vmem:[#allocation8 + $0x38] sm:$0xff]
    %v179 = vld [vmem:[%s5] sm:$0x3]
    %v181 = vlaneseq
    %v182 = vshrl.u32 %v181, 7
    %v183 = vsub.s32 0, %v182
    %v184 = vrot.slane %v179, %v183
    %v185 = vlaneseq
    %v186 = vshrl.u32 %v185, 7
    %v187 = vsub.s32 1, %v186
    %v188 = vrot.slane %v179, %v187
    %vm191 = vcmask 261120
    %v193 = vsel %vm191, %v79, 0
    %195 = vmatprep.subr.mxu0 %v172
    %196 = vmatpush1.msra.mxu0 %v171
    %197 = vmatprep.subr.mxu0 %v174
    %198 = vmatpush1.msra.mxu0 %v173
    %199 = vmatprep.subr.mxu0 %v176
    %200 = vmatpush1.msra.mxu0 %v175
    %201 = vmatprep.subr.mxu0 %v178
    %202 = vmatpush1.msra.mxu0 %v177
    %203 = vmatprep.subr.mxu0 0.0
    %204 = vmatpush1.msra.mxu0 0.0
    %205 = vmatprep.subr.mxu0 0.0
    %206 = vmatpush1.msra.mxu0 0.0
    %207 = vmatprep.subr.mxu0 0.0
    %208 = vmatpush1.msra.mxu0 0.0
    %209 = vmatprep.subr.mxu0 0.0
    %210 = vmatpush1.msra.mxu0 0.0
    %211 = vmatprep.subr.mxu0 0.0
    %212 = vmatpush1.msra.mxu0 0.0
    %213 = vmatprep.subr.mxu0 0.0
    %214 = vmatpush1.msra.mxu0 0.0
    %215 = vmatprep.subr.mxu0 0.0
    %216 = vmatpush1.msra.mxu0 0.0
    %217 = vmatprep.subr.mxu0 0.0
    %218 = vmatpush1.msra.mxu0 0.0
    %219 = vmatprep.subr.mxu0 0.0
    %220 = vmatpush1.msra.mxu0 0.0
    %221 = vmatprep.subr.mxu0 0.0
    %222 = vmatpush1.msra.mxu0 0.0
    %223 = vmatprep.subr.mxu0 0.0
    %224 = vmatpush1.msra.mxu0 0.0
    %225 = vmatprep.subr.mxu0 0.0
    %226 = vmatpush1.msra.mxu0 0.0
    %227 = vmatprep.subr.mxu0 0.0
    %228 = vmatpush1.msra.mxu0 0.0
    %229 = vmatprep.subr.mxu0 0.0
    %230 = vmatpush1.msra.mxu0 0.0
    %231 = vmatprep.subr.mxu0 0.0
    %232 = vmatpush1.msra.mxu0 0.0
    %233 = vmatprep.subr.mxu0 0.0
    %234 = vmatpush1.msra.mxu0 0.0
    %235 = vmatprep.subr.mxu0 0.0
    %236 = vmatpush1.msra.mxu0 0.0
    %237 = vmatprep.subr.mxu0 0.0
    %238 = vmatpush1.msra.mxu0 0.0
    %239 = vmatprep.subr.mxu0 0.0
    %240 = vmatpush1.msra.mxu0 0.0
    %241 = vmatprep.subr.mxu0 0.0
    %242 = vmatpush1.msra.mxu0 0.0
    %243 = vmatprep.subr.mxu0 0.0
    %244 = vmatpush1.msra.mxu0 0.0
    %245 = vmatprep.subr.mxu0 0.0
    %246 = vmatpush1.msra.mxu0 0.0
    %247 = vmatprep.subr.mxu0 0.0
    %248 = vmatpush1.msra.mxu0 0.0
    %249 = vmatprep.subr.mxu0 0.0
    %250 = vmatpush1.msra.mxu0 0.0
    %251 = vmatprep.subr.mxu0 0.0
    %252 = vmatpush1.msra.mxu0 0.0
    %253 = vmatprep.subr.mxu0 0.0
    %254 = vmatpush1.msra.mxu0 0.0
    %255 = vmatprep.subr.mxu0 0.0
    %256 = vmatpush1.msra.mxu0 0.0
    %257 = vmatprep.subr.mxu0 0.0
    %258 = vmatpush1.msra.mxu0 0.0
    %259 = vmatprep.mubr.f32.mxu0 0.0
    %260 = vmatmul.mubr.f32.gmra.mrb[0].mxu0 %v193
    %v261 = vpop.f32.mrb[0].mxu0
    %v262 = vadd.f32 %v184, %v261
    %v263 = vpop.f32.mrb[0].mxu0
    %v264 = vadd.f32 %v188, %v263
    %265 = vdwg.mxu0
    %v266 = vmul.f32 %v167, %v262
    %267 = vst [vmem:[#allocation11] sm:$0xff] %v266
    %v268 = vadd.f32 %v169, %v264
    %269 = vst [vmem:[#allocation10] sm:$0xff] %v268
    // Predicated region
    $region42: #{tpu_custom_call.1} parent=1 // pred_check
      _
    $region43: #{tpu_custom_call.1} parent=1 // pred_check_branch
      %271 = sbr.rel (0) target = $region45
    $region44: #{tpu_custom_call.1} parent=1 // pred_region
      %s273 = ssub.s32 128, 128
      %274 = vsyncadd [#allocation4], %s273
      %s276 = sshll.u32 [#allocation10], 4
      %s277 = int_to_ptr.vmem [resolvable:$true] %s276
      %279 = dma.vmem_to_hbm [thread:$0]  %s277, 128, %s6, [#allocation4]
    $region45: #{tpu_custom_call.1} parent=1 // pred_fallthru
      _
    // Predicated region
    $region46: #{tpu_custom_call.1} parent=1 // pred_check
      _
    $region47: #{tpu_custom_call.1} parent=1 // pred_check_branch
      %281 = sbr.rel (0) target = $region49
    $region48: #{tpu_custom_call.1} parent=1 // pred_region
      %s283 = ssub.s32 128, 128
      %284 = vsyncadd [#allocation12], %s283
      %s286 = sshll.u32 [#allocation11], 4
      %s287 = int_to_ptr.vmem [resolvable:$true] %s286
      %289 = dma.vmem_to_hbm [thread:$0]  %s287, 128, %s7, [#allocation12]
    $region49: #{tpu_custom_call.1} parent=1 // pred_fallthru
      _
    // Predicated region
    $region50: #{tpu_custom_call.1} parent=1 // pred_check
      _
    $region51: #{tpu_custom_call.1} parent=1 // pred_check_branch
      %291 = sbr.rel (0) target = $region53
    $region52: #{tpu_custom_call.1} parent=1 // pred_region
      %292 = dma.done [#allocation4], 128
    $region53: #{tpu_custom_call.1} parent=1 // pred_fallthru
      _
    // Predicated region
    $region54: #{tpu_custom_call.1} parent=1 // pred_check
      _
    $region55: #{tpu_custom_call.1} parent=1 // pred_check_branch
      %294 = sbr.rel (0) target = $region57
    $region56: #{tpu_custom_call.1} parent=1 // pred_region
      %295 = dma.done [#allocation12], 128
    $region57: #{tpu_custom_call.1} parent=1 // pred_fallthru
      _
    %296 = vsyncpa [#allocation3], 1
    %297 = vsyncpa [#allocation6], 1
    %298 = vsyncpa [#allocation9], 1
    %299 = vsyncpa [#allocation4], 1
    %300 = vsyncpa [#allocation12], 1

</llo_original>
